<compile_context>
chip_gen: v5e
topology: v5e:2x2
jax: 0.10.0
libtpu: 0.0.40
codegen_flags: <defaults>
</compile_context>

<pallas_src>
import jax
import jax.numpy as jnp
from jax.experimental import pallas as pl
from jax.experimental.pallas import tpu as pltpu


def se_block_kernel(x_ref, wd_ref, wu_ref, o_ref):
    # x_ref/o_ref: (Bn, C, HW)   wd_ref: (C//r, C)   wu_ref: (C, C//r)
    hw = x_ref.shape[-1]

    # --- squeeze: global average pool over spatial (accumulate in f32) ---
    pooled = jnp.sum(x_ref[...].astype(jnp.float32), axis=-1) * (1.0 / hw)   # (Bn, C)

    # --- excitation on the VPU: broadcast-multiply-reduce (no MXU) ---
    wd = wd_ref[...].astype(jnp.float32)                                     # (Cr, C)
    wu = wu_ref[...].astype(jnp.float32)                                     # (C, Cr)
    hidden = jnp.sum(pooled[:, None, :] * wd[None, :, :], axis=-1)           # (Bn, Cr)
    hidden = jnp.maximum(hidden, 0.0)
    gate = jnp.sum(hidden[:, None, :] * wu[None, :, :], axis=-1)             # (Bn, C)
    gate = jax.nn.sigmoid(gate)                                              # f32

    # --- scale: re-read x from VMEM, broadcast channel gate over spatial ---
    o_ref[...] = (x_ref[...] * gate[:, :, None]).astype(o_ref.dtype)


def _pick_batch_block(n, bytes_per_batch, target_bytes=2 << 20):
    """Largest divisor Bn of n such that the (Bn, C, HW) block stays near the
    ~2 MiB DMA sweet spot and, when n >= 2, at least 2 grid steps remain so a
    'parallel' grid axis keeps both v7x TensorCores busy."""
    best = 1
    for bn in range(1, n + 1):
        if n % bn:
            continue
        if bn > 1 and bn * bytes_per_batch > target_bytes:
            continue
        if n >= 2 and (n // bn) < 2:
            continue
        best = bn
    return best


def se_block(x_nchw, w_down, w_up):
    """x_nchw: (N, C, H, W). w_down: (C//r, C). w_up: (C, C//r)."""
    N, C, H, W = x_nchw.shape
    HW = H * W
    # NOTE: keep H*W a multiple of 128 when possible (here 256 = 2 full lanes);
    # ragged spatial sizes force masked partial stores on the output path.
    x_flat = x_nchw.reshape(N, C, HW)

    itemsize = jnp.dtype(x_flat.dtype).itemsize
    Bn = _pick_batch_block(N, C * HW * itemsize)
    grid = (N // Bn,)

    block_bytes = Bn * C * HW * itemsize
    weight_bytes = (w_down.size * jnp.dtype(w_down.dtype).itemsize
                    + w_up.size * jnp.dtype(w_up.dtype).itemsize)
    # in + out blocks, each double-buffered, plus replicated weights and slack.
    vmem_needed = 4 * block_bytes + 2 * weight_bytes + (2 << 20)
    vmem_limit = int(min(64 << 20, max(vmem_needed, 16 << 20)))  # v7x-safe cap

    out = pl.pallas_call(
        se_block_kernel,
        out_shape=jax.ShapeDtypeStruct((N, C, HW), x_flat.dtype),
        grid_spec=pltpu.PrefetchScalarGridSpec(
            num_scalar_prefetch=0,
            grid=grid,
            in_specs=[
                pl.BlockSpec((Bn, C, HW), lambda n: (n, 0, 0)),
                pl.BlockSpec(w_down.shape, lambda n: (0, 0)),  # replicated weights
                pl.BlockSpec(w_up.shape, lambda n: (0, 0)),
            ],
            out_specs=pl.BlockSpec((Bn, C, HW), lambda n: (n, 0, 0)),
        ),
        compiler_params=pltpu.CompilerParams(
            dimension_semantics=("parallel",),
            vmem_limit_bytes=vmem_limit,
        ),
    )(x_flat, w_down, w_up)

    return out.reshape(N, C, H, W)


def se_block_ref(x, w_down, w_up):
    # pure-JAX reference matching the PyTorch module semantics
    pooled = jnp.mean(x, axis=(2, 3), keepdims=True)            # (N, C, 1, 1)
    h = jnp.einsum('oc,nchw->nohw', w_down, pooled)             # 1x1 conv, no bias
    h = jnp.maximum(h, 0.0)
    g = jnp.einsum('co,nohw->nchw', w_up, h)
    g = jax.nn.sigmoid(g)
    return g * x


if __name__ == "__main__":
    # planes must be divisible by r=16 for the PyTorch module to make sense.
    N, C, H, W = 4, 32, 16, 16
    r = 16
    Cr = C // r  # = 2

    key = jax.random.PRNGKey(0)
    kx, kd, ku = jax.random.split(key, 3)
    x = jax.random.normal(kx, (N, C, H, W), dtype=jnp.float32)
    # shapes from nn.Conv2d(C, C//r, 1, bias=False) / nn.Conv2d(C//r, C, 1, bias=False)
    w_down = jax.random.normal(kd, (Cr, C), dtype=jnp.float32) * 0.1
    w_up = jax.random.normal(ku, (C, Cr), dtype=jnp.float32) * 0.1

    out = jax.block_until_ready(se_block(x, w_down, w_up))
    ref = se_block_ref(x, w_down, w_up)
    assert out.shape == (N, C, H, W)
    assert jnp.allclose(out, ref, atol=1e-5, rtol=1e-5)
    print("KERNEL_OK")
</pallas_src>

<mosaic_0001>
module attributes {stable_mosaic.version = 11 : i64} {
  func.func @se_block_kernel(%arg0: i32, %arg1: memref<2x32x256xf32, #tpu.memory_space<vmem>>, %arg2: memref<2x32xf32, #tpu.memory_space<vmem>>, %arg3: memref<32x2xf32, #tpu.memory_space<vmem>>, %arg4: memref<2x32x256xf32, #tpu.memory_space<vmem>>) attributes {dimension_semantics = [#tpu.dimension_semantics<parallel>], iteration_bounds = array<i64: 2>, scalar_prefetch = 0 : i64, scratch_operands = 0 : i64, tpu.core_type = #tpu.core_type<tc>, window_params = [{transform_indices = @transform_0, window_bounds = array<i64: 2, 32, 256>}, {pipeline_mode = #tpu.pipeline_mode<synchronous>, transform_indices = @transform_1, window_bounds = array<i64: 2, 32>}, {pipeline_mode = #tpu.pipeline_mode<synchronous>, transform_indices = @transform_2, window_bounds = array<i64: 32, 2>}, {transform_indices = @transform_3, window_bounds = array<i64: 2, 32, 256>}]} {
    %c0 = arith.constant 0 : index
    %c0_0 = arith.constant 0 : index
    %c0_1 = arith.constant 0 : index
    %0 = vector.load %arg1[%c0, %c0_0, %c0_1] : memref<2x32x256xf32, #tpu.memory_space<vmem>>, vector<2x32x256xf32>
    %cst = arith.constant dense<0.000000e+00> : vector<2x32xf32>
    %1 = vector.multi_reduction <add>, %0, %cst [2] : vector<2x32x256xf32> to vector<2x32xf32>
    %cst_2 = arith.constant 3.906250e-03 : f32
    %2 = vector.broadcast %cst_2 : f32 to vector<2x32xf32>
    %3 = arith.mulf %1, %2 : vector<2x32xf32>
    %c0_3 = arith.constant 0 : index
    %c0_4 = arith.constant 0 : index
    %4 = vector.load %arg2[%c0_3, %c0_4] : memref<2x32xf32, #tpu.memory_space<vmem>>, vector<2x32xf32>
    %c0_5 = arith.constant 0 : index
    %c0_6 = arith.constant 0 : index
    %5 = vector.load %arg3[%c0_5, %c0_6] : memref<32x2xf32, #tpu.memory_space<vmem>>, vector<32x2xf32>
    %6 = vector.shape_cast %3 : vector<2x32xf32> to vector<2x1x32xf32>
    %7 = vector.shape_cast %4 : vector<2x32xf32> to vector<1x2x32xf32>
    %8 = vector.broadcast %6 : vector<2x1x32xf32> to vector<2x2x32xf32>
    %9 = vector.broadcast %7 : vector<1x2x32xf32> to vector<2x2x32xf32>
    %10 = arith.mulf %8, %9 : vector<2x2x32xf32>
    %cst_7 = arith.constant dense<0.000000e+00> : vector<2x2xf32>
    %11 = vector.multi_reduction <add>, %10, %cst_7 [2] : vector<2x2x32xf32> to vector<2x2xf32>
    %cst_8 = arith.constant 0.000000e+00 : f32
    %12 = vector.broadcast %cst_8 : f32 to vector<2x2xf32>
    %13 = arith.maximumf %11, %12 : vector<2x2xf32>
    %14 = vector.shape_cast %13 : vector<2x2xf32> to vector<2x1x2xf32>
    %15 = vector.shape_cast %5 : vector<32x2xf32> to vector<1x32x2xf32>
    %16 = vector.broadcast %14 : vector<2x1x2xf32> to vector<2x32x2xf32>
    %17 = vector.broadcast %15 : vector<1x32x2xf32> to vector<2x32x2xf32>
    %18 = arith.mulf %16, %17 : vector<2x32x2xf32>
    %cst_9 = arith.constant dense<0.000000e+00> : vector<2x32xf32>
    %19 = vector.multi_reduction <add>, %18, %cst_9 [2] : vector<2x32x2xf32> to vector<2x32xf32>
    %20 = arith.negf %19 : vector<2x32xf32>
    %21 = math.exp %20 : vector<2x32xf32>
    %cst_10 = arith.constant 1.000000e+00 : f32
    %22 = vector.broadcast %cst_10 : f32 to vector<2x32xf32>
    %23 = arith.addf %22, %21 : vector<2x32xf32>
    %24 = arith.divf %22, %23 : vector<2x32xf32>
    %c0_11 = arith.constant 0 : index
    %c0_12 = arith.constant 0 : index
    %c0_13 = arith.constant 0 : index
    %25 = vector.load %arg1[%c0_11, %c0_12, %c0_13] : memref<2x32x256xf32, #tpu.memory_space<vmem>>, vector<2x32x256xf32>
    %26 = vector.shape_cast %24 : vector<2x32xf32> to vector<2x32x1xf32>
    %27 = vector.broadcast %26 : vector<2x32x1xf32> to vector<2x32x256xf32>
    %28 = arith.mulf %25, %27 : vector<2x32x256xf32>
    %c0_14 = arith.constant 0 : index
    %c0_15 = arith.constant 0 : index
    %c0_16 = arith.constant 0 : index
    %29 = vector.load %arg4[%c0_14, %c0_15, %c0_16] : memref<2x32x256xf32, #tpu.memory_space<vmem>>, vector<2x32x256xf32>
    tpu.vector_store %arg4[%c0_14, %c0_15, %c0_16], %28 {strides = array<i32>} : memref<2x32x256xf32, #tpu.memory_space<vmem>>, vector<2x32x256xf32>,
    return
  }
  func.func @transform_0(%arg0: i32) -> (i32, i32, i32) {
    %c0_i32 = arith.constant 0 : i32
    %c0_i32_0 = arith.constant 0 : i32
    %c0_i32_1 = arith.constant 0 : i32
    return %arg0, %c0_i32, %c0_i32_0 : i32, i32, i32
  }
  func.func @transform_1(%arg0: i32) -> (i32, i32) {
    %c0_i32 = arith.constant 0 : i32
    %c0_i32_0 = arith.constant 0 : i32
    %c0_i32_1 = arith.constant 0 : i32
    return %c0_i32, %c0_i32_0 : i32, i32
  }
  func.func @transform_2(%arg0: i32) -> (i32, i32) {
    %c0_i32 = arith.constant 0 : i32
    %c0_i32_0 = arith.constant 0 : i32
    %c0_i32_1 = arith.constant 0 : i32
    return %c0_i32, %c0_i32_0 : i32, i32
  }
  func.func @transform_3(%arg0: i32) -> (i32, i32, i32) {
    %c0_i32 = arith.constant 0 : i32
    %c0_i32_0 = arith.constant 0 : i32
    %c0_i32_1 = arith.constant 0 : i32
    return %arg0, %c0_i32, %c0_i32_0 : i32, i32, i32
  }
}

</mosaic_0001>

<llo_original>
// kernel: tpu_custom_call.1
$region0: #{tpu_custom_call.1}
  #allocation0 [shape = 'u32[]', space=smem, size = 0x4, offset = 0x4, fixed_abs, tag = 'smem constant byte address 0x4 - core index']
  #allocation1 [shape = 'u32[72,128]{1,0:T(1,128)}', space=vmem, size = 0x9000, scoped, tag = 'internal scratch']
  %s0 = inlined_call_operand.hbm [shape: f32[4,32,256], index: 0, kind: input, shape index: {}]
  %s1 = inlined_call_operand.vmem [shape: f32[2,32], index: 1, kind: input, shape index: {}]
  %s2 = inlined_call_operand.vmem [shape: f32[32,2], index: 2, kind: input, shape index: {}]
  %s3 = inlined_call_operand.hbm [shape: f32[4,32,256], index: 3, kind: output, shape index: {}]
  %s4 = sld [smem:[#allocation0]]
  $region49: #{tpu_custom_call.1} parent=0
    _
  %s6 = ssub.s32 1, %s4
  %s7 = scalar_select 0, %s6, %s4
  $region1: #{tpu_custom_call.1} parent=0
    #allocation2 [shape = 'u8[131072]{0}', space=vmem, size = 0x20000, scoped, tag = 'input window, operand 0']
    #allocation3 [shape = 's32[2]{0}', space=sflag, size = 0x8, scoped, tag = 'scoped memory for tpu_custom_call.1']
    #allocation4 [shape = 's32[2]{0}', space=sflag, size = 0x8, scoped, tag = 'scoped memory for tpu_custom_call.1']
    #allocation5 [shape = 'u8[131072]{0}', space=vmem, size = 0x20000, scoped, tag = 'output window, operand 0']
    %8 = vsyncpa [#allocation3], 0
    %s9 = scalar_lea.sflag [#allocation3], 1
    %10 = vsyncpa %s9, 0
    %11 = vsyncpa [#allocation4], 0
    %s12 = scalar_lea.sflag [#allocation4], 1
    %13 = vsyncpa %s12, 0
    loop: start=0, step=1, limit=4
    $region2: #{tpu_custom_call.1} parent=1 // loop_pre_header
      _
    $region3: #{tpu_custom_call.1} parent=1 // loop_header
      %s15 = sphi 0, %s19
      %p16 = scmp.ge.s32.totalorder %s15, 4
      %s25 = sphi 0, %s27
      %s28 = sphi 0, %s25
      %s29 = sphi 0, %s28
      %s45 = sphi 0, %s29
      %s49 = sphi 0, %s49
      %s51 = sphi 0, %s49
      %s52 = sphi 0, %s51
      %s66 = sphi 0, %s52
      %s70 = sphi 0, %s70
      %s72 = sphi 0, %s70
      %s73 = sphi 0, %s72
      %s87 = sphi 0, %s73
      %s93 = sphi 0, %s95
      %s96 = sphi 0, %s93
      %s97 = sphi 0, %s96
      %s113 = sphi 0, %s97
    $region4: #{tpu_custom_call.1} parent=1 // loop_header_branch
      %18 = sbr.rel (%p16) target = $region8
    $region5: #{tpu_custom_call.1} parent=1 // loop_body
      %s20 = ssub.s32 %s15, 1
      %s21 = ssub.s32 %s15, 2
      %s22 = sadd.s32 %s15, 1
      %s23 = ssub.s32 %s15, %s22
      %p24 = scmp.eq.s32.totalorder %s23, 0
      %s26 = sadd.s32 %s25, 1
      %s27 = scalar_select %p24, %s25, %s26
      %p30 = pneg %p24
      %p31 = scmp.eq.s32.totalorder %s15, 1
      %p32 = por %p30, %p31
      %p33 = scmp.ne.s32.totalorder %s25, %s28
      %p34 = scmp.eq.s32.totalorder %s15, 0
      %p35 = por %p33, %p34
      %p36 = scmp.ne.s32.totalorder %s25, %s28
      %p37 = scmp.eq.s32.totalorder %s20, 1
      %p38 = por %p36, %p37
      %p39 = scmp.ne.s32.totalorder %s28, %s29
      %p40 = scmp.eq.s32.totalorder %s20, 0
      %p41 = por %p39, %p40
      %p42 = scmp.ne.s32.totalorder %s28, %s29
      %p43 = scmp.eq.s32.totalorder %s21, 1
      %p44 = por %p42, %p43
      %p46 = scmp.ne.s32.totalorder %s29, %s45
      %p47 = scmp.eq.s32.totalorder %s21, 0
      %p48 = por %p46, %p47
      %s50 = sadd.s32 %s49, 1
      %p53 = scmp.eq.s32.totalorder %s15, 1
      %p54 = scmp.ne.s32.totalorder %s49, %s51
      %p55 = scmp.eq.s32.totalorder %s15, 0
      %p56 = por %p54, %p55
      %p57 = scmp.ne.s32.totalorder %s49, %s51
      %p58 = scmp.eq.s32.totalorder %s20, 1
      %p59 = por %p57, %p58
      %p60 = scmp.ne.s32.totalorder %s51, %s52
      %p61 = scmp.eq.s32.totalorder %s20, 0
      %p62 = por %p60, %p61
      %p63 = scmp.ne.s32.totalorder %s51, %s52
      %p64 = scmp.eq.s32.totalorder %s21, 1
      %p65 = por %p63, %p64
      %p67 = scmp.ne.s32.totalorder %s52, %s66
      %p68 = scmp.eq.s32.totalorder %s21, 0
      %p69 = por %p67, %p68
      %s71 = sadd.s32 %s70, 1
      %p74 = scmp.eq.s32.totalorder %s15, 1
      %p75 = scmp.ne.s32.totalorder %s70, %s72
      %p76 = scmp.eq.s32.totalorder %s15, 0
      %p77 = por %p75, %p76
      %p78 = scmp.ne.s32.totalorder %s70, %s72
      %p79 = scmp.eq.s32.totalorder %s20, 1
      %p80 = por %p78, %p79
      %p81 = scmp.ne.s32.totalorder %s72, %s73
      %p82 = scmp.eq.s32.totalorder %s20, 0
      %p83 = por %p81, %p82
      %p84 = scmp.ne.s32.totalorder %s72, %s73
      %p85 = scmp.eq.s32.totalorder %s21, 1
      %p86 = por %p84, %p85
      %p88 = scmp.ne.s32.totalorder %s73, %s87
      %p89 = scmp.eq.s32.totalorder %s21, 0
      %p90 = por %p88, %p89
      %s91 = ssub.s32 %s15, %s22
      %p92 = scmp.eq.s32.totalorder %s91, 0
      %s94 = sadd.s32 %s93, 1
      %s95 = scalar_select %p92, %s93, %s94
      %p98 = pneg %p92
      %p99 = scmp.eq.s32.totalorder %s15, 1
      %p100 = por %p98, %p99
      %p101 = scmp.ne.s32.totalorder %s93, %s96
      %p102 = scmp.eq.s32.totalorder %s15, 0
      %p103 = por %p101, %p102
      %p104 = scmp.ne.s32.totalorder %s93, %s96
      %p105 = scmp.eq.s32.totalorder %s20, 1
      %p106 = por %p104, %p105
      %p107 = scmp.ne.s32.totalorder %s96, %s97
      %p108 = scmp.eq.s32.totalorder %s20, 0
      %p109 = por %p107, %p108
      %p110 = scmp.ne.s32.totalorder %s96, %s97
      %p111 = scmp.eq.s32.totalorder %s21, 1
      %p112 = por %p110, %p111
      %p114 = scmp.ne.s32.totalorder %s97, %s113
      %p115 = scmp.eq.s32.totalorder %s21, 0
      %p116 = por %p114, %p115
      %p117 = scmp.le.s32.totalorder 1, %s15
      %p118 = scmp.lt.s32.totalorder %s15, 3
      %p119 = pnand %p117, %p118
      %p120 = pneg %p119
      // Predicated region
      $region9: #{tpu_custom_call.1} parent=5 // pred_check
        _
      $region10: #{tpu_custom_call.1} parent=5 // pred_check_branch
        %122 = sbr.rel (%p119) target = $region12
      $region11: #{tpu_custom_call.1} parent=5 // pred_region
        %s123 = ssub.s32 %s15, 1
        // Predicated region
        $region13: #{tpu_custom_call.1} parent=11 // pred_check
          %p124 = pneg %p62
        $region14: #{tpu_custom_call.1} parent=11 // pred_check_branch
          %126 = sbr.rel (%p124) target = $region16
        $region15: #{tpu_custom_call.1} parent=11 // pred_region
          _
        $region16: #{tpu_custom_call.1} parent=11 // pred_fallthru
          _
        // Predicated region
        $region17: #{tpu_custom_call.1} parent=11 // pred_check
          %p127 = pneg %p83
        $region18: #{tpu_custom_call.1} parent=11 // pred_check_branch
          %129 = sbr.rel (%p127) target = $region20
        $region19: #{tpu_custom_call.1} parent=11 // pred_region
          _
        $region20: #{tpu_custom_call.1} parent=11 // pred_fallthru
          _
      $region12: #{tpu_custom_call.1} parent=5 // pred_fallthru
        _
      %p130 = scmp.lt.s32.totalorder %s15, 2
      // Predicated region
      $region21: #{tpu_custom_call.1} parent=5 // pred_check
        %p131 = pneg %p130
      $region22: #{tpu_custom_call.1} parent=5 // pred_check_branch
        %133 = sbr.rel (%p131) target = $region24
      $region23: #{tpu_custom_call.1} parent=5 // pred_region
        // Predicated region
        $region25: #{tpu_custom_call.1} parent=23 // pred_check
          %p134 = pneg %p35
        $region26: #{tpu_custom_call.1} parent=23 // pred_check_branch
          %136 = sbr.rel (%p134) target = $region28
        $region27: #{tpu_custom_call.1} parent=23 // pred_region
          %s137 = sand.u32 %s25, 1
          %s138 = scalar_lea.sflag [#allocation3], %s137
          %s139 = sand.u32 %s25, 1
          %s140 = smul.addr %s139, 128
          %s141 = scalar_lea.vmem [#allocation2], %s140
          %s142 = smul.u32 2, %s15
          %144 = vsyncadd %s138, 0
          %s145 = smul.addr %s142, 8
          %s146 = smul.addr %s145, 8
          %s147 = scalar_lea.hbm %s0, %s146
          %s148 = sshll.u32 %s147, 4
          %s149 = int_to_ptr.hbm [resolvable:$true] %s148
          %s150 = sshll.u32 %s141, 4
          %s151 = int_to_ptr.vmem [resolvable:$true] %s150
          %156 = dma.hbm_to_vmem [thread:$0]  %s149, 2048, %s151, %s138, 256, 256, 16
        $region28: #{tpu_custom_call.1} parent=23 // pred_fallthru
          _
      $region24: #{tpu_custom_call.1} parent=5 // pred_fallthru
        _
      %p157 = scmp.le.s32.totalorder 1, %s15
      %p158 = scmp.lt.s32.totalorder %s15, 3
      %p159 = pnand %p157, %p158
      %p160 = pneg %p159
      // Predicated region
      $region29: #{tpu_custom_call.1} parent=5 // pred_check
        _
      $region30: #{tpu_custom_call.1} parent=5 // pred_check_branch
        %162 = sbr.rel (%p159) target = $region32
      $region31: #{tpu_custom_call.1} parent=5 // pred_region
        %s163 = ssub.s32 %s15, 1
        %s164 = sand.u32 %s28, 1
        %s165 = scalar_lea.sflag [#allocation3], %s164
        %s166 = sand.u32 %s28, 1
        %s167 = smul.addr %s166, 128
        %s168 = scalar_lea.vmem [#allocation2], %s167
        // Predicated region
        $region33: #{tpu_custom_call.1} parent=31 // pred_check
          %p169 = pneg %p41
        $region34: #{tpu_custom_call.1} parent=31 // pred_check_branch
          %171 = sbr.rel (%p169) target = $region36
        $region35: #{tpu_custom_call.1} parent=31 // pred_region
          %173 = dma.done %s165, 2048
        $region36: #{tpu_custom_call.1} parent=31 // pred_fallthru
          _
        %s174 = sand.u32 %s28, 1
        %s175 = scalar_lea.sflag [#allocation3], %s174
        %s176 = sand.u32 %s28, 1
        %s177 = smul.addr %s176, 128
        %s178 = scalar_lea.vmem [#allocation2], %s177
        %p179 = pneg %p41
        %p180 = pneg %p38
        %p181 = pneg %p62
        %p182 = pneg %p59
        %p183 = pneg %p83
        %p184 = pneg %p80
        %p185 = pneg %p109
        %p186 = pneg %p106
        %s187 = sand.u32 %s96, 1
        %s188 = scalar_lea.sflag [#allocation4], %s187
        %s189 = sand.u32 %s96, 1
        %s190 = smul.addr %s189, 128
        %s191 = scalar_lea.vmem [#allocation5], %s190
        %s192 = smul.u32 2, %s20
        %s193 = smul.u32 2, %s20
        %v194 = vld [vmem:[%s168] sm:$0xff]
        %v195 = vld [vmem:[%s168 + $0x8] sm:$0xff]
        %v196 = vld [vmem:[%s168 + $0x10] sm:$0xff]
        %v197 = vld [vmem:[%s168 + $0x18] sm:$0xff]
        %v198 = vld [vmem:[%s168 + $0x20] sm:$0xff]
        %v199 = vld [vmem:[%s168 + $0x28] sm:$0xff]
        %v200 = vld [vmem:[%s168 + $0x30] sm:$0xff]
        %v201 = vld [vmem:[%s168 + $0x38] sm:$0xff]
        %v202 = vld [vmem:[%s168 + $0x40] sm:$0xff]
        %v203 = vld [vmem:[%s168 + $0x48] sm:$0xff]
        %v204 = vld [vmem:[%s168 + $0x50] sm:$0xff]
        %v205 = vld [vmem:[%s168 + $0x58] sm:$0xff]
        %v206 = vld [vmem:[%s168 + $0x60] sm:$0xff]
        %v207 = vld [vmem:[%s168 + $0x68] sm:$0xff]
        %v208 = vld [vmem:[%s168 + $0x70] sm:$0xff]
        %v209 = vld [vmem:[%s168 + $0x78] sm:$0xff]
        %v210 = vadd.f32 %v194, %v195
        %211 = vadd.xlane.f32.xlu0 %v210
        %v212 = vpop.xlane.xlu0 %211
        %v213 = vadd.f32 %v196, %v197
        %214 = vadd.xlane.f32.xlu0 %v213
        %v215 = vpop.xlane.xlu0 %214
        %v216 = vadd.f32 %v198, %v199
        %217 = vadd.xlane.f32.xlu0 %v216
        %v218 = vpop.xlane.xlu0 %217
        %v219 = vadd.f32 %v200, %v201
        %220 = vadd.xlane.f32.xlu0 %v219
        %v221 = vpop.xlane.xlu0 %220
        %v222 = vadd.f32 %v202, %v203
        %223 = vadd.xlane.f32.xlu0 %v222
        %v224 = vpop.xlane.xlu0 %223
        %v225 = vadd.f32 %v204, %v205
        %226 = vadd.xlane.f32.xlu0 %v225
        %v227 = vpop.xlane.xlu0 %226
        %v228 = vadd.f32 %v206, %v207
        %229 = vadd.xlane.f32.xlu0 %v228
        %v230 = vpop.xlane.xlu0 %229
        %v231 = vadd.f32 %v208, %v209
        %232 = vadd.xlane.f32.xlu0 %v231
        %v233 = vpop.xlane.xlu0 %232
        %v234 = vmul.f32 %v212, 0.00390625
        %v235 = vmul.f32 %v215, 0.00390625
        %v236 = vmul.f32 %v218, 0.00390625
        %v237 = vmul.f32 %v221, 0.00390625
        %v238 = vmul.f32 %v224, 0.00390625
        %v239 = vmul.f32 %v227, 0.00390625
        %v240 = vmul.f32 %v230, 0.00390625
        %v241 = vmul.f32 %v233, 0.00390625
        %v242 = vld [vmem:[%s1] sm:$0x3]
        %v243 = vld [vmem:[%s2] sm:$0xff]
        %v244 = vld [vmem:[%s2 + $0x8] sm:$0xff]
        %v245 = vld [vmem:[%s2 + $0x10] sm:$0xff]
        %v246 = vld [vmem:[%s2 + $0x18] sm:$0xff]
        %v248 = vperm.slane %v242, 0
        %v249 = vlaneseq
        %v250 = vshrl.u32 %v249, 7
        %252 = vset.pattern.permute.xlu0 %v250
        %253 = vperm.xlu0 %252, %v248
        %v254 = vpop.permute.xlu0 %253
        %v255 = vlaneseq
        %v256 = vshrl.u32 %v255, 7
        %v257 = vadd.s32 %v256, 8
        %258 = vset.pattern.permute.xlu0 %v257
        %259 = vperm.xlu0 %258, %v248
        %v260 = vpop.permute.xlu0 %259
        %v261 = vlaneseq
        %v262 = vshrl.u32 %v261, 7
        %v263 = vadd.s32 %v262, 16
        %264 = vset.pattern.permute.xlu0 %v263
        %265 = vperm.xlu0 %264, %v248
        %v266 = vpop.permute.xlu0 %265
        %v267 = vlaneseq
        %v268 = vshrl.u32 %v267, 7
        %v269 = vadd.s32 %v268, 24
        %270 = vset.pattern.permute.xlu0 %v269
        %271 = vperm.xlu0 %270, %v248
        %v272 = vpop.permute.xlu0 %271
        %v273 = vperm.slane %v242, 1
        %v274 = vlaneseq
        %v275 = vshrl.u32 %v274, 7
        %277 = vset.pattern.permute.xlu0 %v275
        %278 = vperm.xlu0 %277, %v273
        %v279 = vpop.permute.xlu0 %278
        %v280 = vlaneseq
        %v281 = vshrl.u32 %v280, 7
        %v282 = vadd.s32 %v281, 8
        %283 = vset.pattern.permute.xlu0 %v282
        %284 = vperm.xlu0 %283, %v273
        %v285 = vpop.permute.xlu0 %284
        %v286 = vlaneseq
        %v287 = vshrl.u32 %v286, 7
        %v288 = vadd.s32 %v287, 16
        %289 = vset.pattern.permute.xlu0 %v288
        %290 = vperm.xlu0 %289, %v273
        %v291 = vpop.permute.xlu0 %290
        %v292 = vlaneseq
        %v293 = vshrl.u32 %v292, 7
        %v294 = vadd.s32 %v293, 24
        %295 = vset.pattern.permute.xlu0 %v294
        %296 = vperm.xlu0 %295, %v273
        %v297 = vpop.permute.xlu0 %296
        %v306 = vmul.f32 %v234, %v254
        %v307 = vmul.f32 %v235, %v260
        %v308 = vmul.f32 %v236, %v266
        %v309 = vmul.f32 %v237, %v272
        %v310 = vmul.f32 %v234, %v279
        %v311 = vmul.f32 %v235, %v285
        %v312 = vmul.f32 %v236, %v291
        %v313 = vmul.f32 %v237, %v297
        %v314 = vmul.f32 %v238, %v254
        %v315 = vmul.f32 %v239, %v260
        %v316 = vmul.f32 %v240, %v266
        %v317 = vmul.f32 %v241, %v272
        %v318 = vmul.f32 %v238, %v279
        %v319 = vmul.f32 %v239, %v285
        %v320 = vmul.f32 %v240, %v291
        %v321 = vmul.f32 %v241, %v297
        %338 = vset.pattern.permute.xlu0 0
        %339 = vperm.xlu0 %338, %v306
        %v340 = vpop.permute.xlu0 %339
        %341 = vset.pattern.permute.xlu0 0
        %342 = vperm.xlu0 %341, %v307
        %v343 = vpop.permute.xlu0 %342
        %344 = vset.pattern.permute.xlu0 0
        %345 = vperm.xlu0 %344, %v308
        %v346 = vpop.permute.xlu0 %345
        %347 = vset.pattern.permute.xlu0 0
        %348 = vperm.xlu0 %347, %v309
        %v349 = vpop.permute.xlu0 %348
        %350 = vset.pattern.permute.xlu0 0
        %351 = vperm.xlu0 %350, %v310
        %v352 = vpop.permute.xlu0 %351
        %353 = vset.pattern.permute.xlu0 0
        %354 = vperm.xlu0 %353, %v311
        %v355 = vpop.permute.xlu0 %354
        %356 = vset.pattern.permute.xlu0 0
        %357 = vperm.xlu0 %356, %v312
        %v358 = vpop.permute.xlu0 %357
        %359 = vset.pattern.permute.xlu0 0
        %360 = vperm.xlu0 %359, %v313
        %v361 = vpop.permute.xlu0 %360
        %362 = vset.pattern.permute.xlu0 0
        %363 = vperm.xlu0 %362, %v314
        %v364 = vpop.permute.xlu0 %363
        %365 = vset.pattern.permute.xlu0 0
        %366 = vperm.xlu0 %365, %v315
        %v367 = vpop.permute.xlu0 %366
        %368 = vset.pattern.permute.xlu0 0
        %369 = vperm.xlu0 %368, %v316
        %v370 = vpop.permute.xlu0 %369
        %371 = vset.pattern.permute.xlu0 0
        %372 = vperm.xlu0 %371, %v317
        %v373 = vpop.permute.xlu0 %372
        %374 = vset.pattern.permute.xlu0 0
        %375 = vperm.xlu0 %374, %v318
        %v376 = vpop.permute.xlu0 %375
        %377 = vset.pattern.permute.xlu0 0
        %378 = vperm.xlu0 %377, %v319
        %v379 = vpop.permute.xlu0 %378
        %380 = vset.pattern.permute.xlu0 0
        %381 = vperm.xlu0 %380, %v320
        %v382 = vpop.permute.xlu0 %381
        %383 = vset.pattern.permute.xlu0 0
        %384 = vperm.xlu0 %383, %v321
        %v385 = vpop.permute.xlu0 %384
        %v386 = vlaneseq
        %v387 = vand.u32 %v386, 127
        %v388 = vperm.slane %v340, %v387
        %v389 = vadd.s32 %v387, 4294967288
        %v390 = vperm.slane %v343, %v389
        %vm391 = vcmask 130112
        %v392 = vsel %vm391, %v390, %v388
        %v393 = vadd.s32 %v387, 4294967280
        %v394 = vperm.slane %v346, %v393
        %vm395 = vcmask 195712
        %v396 = vsel %vm395, %v394, %v392
        %v397 = vadd.s32 %v387, 4294967272
        %v398 = vperm.slane %v349, %v397
        %vm399 = vcmask 261312
        %v400 = vsel %vm399, %v398, %v396
        %v401 = vperm.slane %v352, %v387
        %v402 = vperm.slane %v355, %v389
        %v403 = vsel %vm391, %v402, %v401
        %v404 = vperm.slane %v358, %v393
        %v405 = vsel %vm395, %v404, %v403
        %v406 = vperm.slane %v361, %v397
        %v407 = vsel %vm399, %v406, %v405
        %v408 = vperm.slane %v364, %v387
        %v409 = vperm.slane %v367, %v389
        %v410 = vsel %vm391, %v409, %v408
        %v411 = vperm.slane %v370, %v393
        %v412 = vsel %vm395, %v411, %v410
        %v413 = vperm.slane %v373, %v397
        %v414 = vsel %vm399, %v413, %v412
        %v415 = vperm.slane %v376, %v387
        %v416 = vperm.slane %v379, %v389
        %v417 = vsel %vm391, %v416, %v415
        %v418 = vperm.slane %v382, %v393
        %v419 = vsel %vm395, %v418, %v417
        %v420 = vperm.slane %v385, %v397
        %v421 = vsel %vm399, %v420, %v419
        %vm422 = vcmask 1041409
        %v423 = vsel %vm422, %v407, %v400
        %v424 = vsel %vm422, %v421, %v414
        %vm427 = vcmask 254976
        %v428 = vsel %vm427, %v423, 0.0
        %429 = vadd.xlane.f32.xlu0 %v428
        %v430 = vpop.xlane.xlu0 %429
        %v431 = vsel %vm427, %v424, 0.0
        %432 = vadd.xlane.f32.xlu0 %v431
        %v433 = vpop.xlane.xlu0 %432
        %v434 = vmax.f32 %v430, 0.0
        %v435 = vmax.f32 %v433, 0.0
        %v440 = vperm.slane %v243, 0
        %v441 = vlaneseq
        %v442 = vshrl.u32 %v441, 7
        %444 = vset.pattern.permute.xlu0 %v442
        %445 = vperm.xlu0 %444, %v440
        %v446 = vpop.permute.xlu0 %445
        %v447 = vperm.slane %v243, 1
        %v448 = vlaneseq
        %v449 = vshrl.u32 %v448, 7
        %451 = vset.pattern.permute.xlu0 %v449
        %452 = vperm.xlu0 %451, %v447
        %v453 = vpop.permute.xlu0 %452
        %v454 = vperm.slane %v243, 2
        %v455 = vlaneseq
        %v456 = vshrl.u32 %v455, 7
        %458 = vset.pattern.permute.xlu0 %v456
        %459 = vperm.xlu0 %458, %v454
        %v460 = vpop.permute.xlu0 %459
        %v461 = vperm.slane %v243, 3
        %v462 = vlaneseq
        %v463 = vshrl.u32 %v462, 7
        %465 = vset.pattern.permute.xlu0 %v463
        %466 = vperm.xlu0 %465, %v461
        %v467 = vpop.permute.xlu0 %466
        %v468 = vperm.slane %v243, 4
        %v469 = vlaneseq
        %v470 = vshrl.u32 %v469, 7
        %472 = vset.pattern.permute.xlu0 %v470
        %473 = vperm.xlu0 %472, %v468
        %v474 = vpop.permute.xlu0 %473
        %v475 = vperm.slane %v243, 5
        %v476 = vlaneseq
        %v477 = vshrl.u32 %v476, 7
        %479 = vset.pattern.permute.xlu0 %v477
        %480 = vperm.xlu0 %479, %v475
        %v481 = vpop.permute.xlu0 %480
        %v482 = vperm.slane %v243, 6
        %v483 = vlaneseq
        %v484 = vshrl.u32 %v483, 7
        %486 = vset.pattern.permute.xlu0 %v484
        %487 = vperm.xlu0 %486, %v482
        %v488 = vpop.permute.xlu0 %487
        %v489 = vperm.slane %v243, 7
        %v490 = vlaneseq
        %v491 = vshrl.u32 %v490, 7
        %493 = vset.pattern.permute.xlu0 %v491
        %494 = vperm.xlu0 %493, %v489
        %v495 = vpop.permute.xlu0 %494
        %v496 = vperm.slane %v244, 0
        %v497 = vlaneseq
        %v498 = vshrl.u32 %v497, 7
        %500 = vset.pattern.permute.xlu0 %v498
        %501 = vperm.xlu0 %500, %v496
        %v502 = vpop.permute.xlu0 %501
        %v503 = vperm.slane %v244, 1
        %v504 = vlaneseq
        %v505 = vshrl.u32 %v504, 7
        %507 = vset.pattern.permute.xlu0 %v505
        %508 = vperm.xlu0 %507, %v503
        %v509 = vpop.permute.xlu0 %508
        %v510 = vperm.slane %v244, 2
        %v511 = vlaneseq
        %v512 = vshrl.u32 %v511, 7
        %514 = vset.pattern.permute.xlu0 %v512
        %515 = vperm.xlu0 %514, %v510
        %v516 = vpop.permute.xlu0 %515
        %v517 = vperm.slane %v244, 3
        %v518 = vlaneseq
        %v519 = vshrl.u32 %v518, 7
        %521 = vset.pattern.permute.xlu0 %v519
        %522 = vperm.xlu0 %521, %v517
        %v523 = vpop.permute.xlu0 %522
        %v524 = vperm.slane %v244, 4
        %v525 = vlaneseq
        %v526 = vshrl.u32 %v525, 7
        %528 = vset.pattern.permute.xlu0 %v526
        %529 = vperm.xlu0 %528, %v524
        %v530 = vpop.permute.xlu0 %529
        %v531 = vperm.slane %v244, 5
        %v532 = vlaneseq
        %v533 = vshrl.u32 %v532, 7
        %535 = vset.pattern.permute.xlu0 %v533
        %536 = vperm.xlu0 %535, %v531
        %v537 = vpop.permute.xlu0 %536
        %v538 = vperm.slane %v244, 6
        %v539 = vlaneseq
        %v540 = vshrl.u32 %v539, 7
        %542 = vset.pattern.permute.xlu0 %v540
        %543 = vperm.xlu0 %542, %v538
        %v544 = vpop.permute.xlu0 %543
        %v545 = vperm.slane %v244, 7
        %v546 = vlaneseq
        %v547 = vshrl.u32 %v546, 7
        %549 = vset.pattern.permute.xlu0 %v547
        %550 = vperm.xlu0 %549, %v545
        %v551 = vpop.permute.xlu0 %550
        %v552 = vperm.slane %v245, 0
        %v553 = vlaneseq
        %v554 = vshrl.u32 %v553, 7
        %556 = vset.pattern.permute.xlu0 %v554
        %557 = vperm.xlu0 %556, %v552
        %v558 = vpop.permute.xlu0 %557
        %v559 = vperm.slane %v245, 1
        %v560 = vlaneseq
        %v561 = vshrl.u32 %v560, 7
        %563 = vset.pattern.permute.xlu0 %v561
        %564 = vperm.xlu0 %563, %v559
        %v565 = vpop.permute.xlu0 %564
        %v566 = vperm.slane %v245, 2
        %v567 = vlaneseq
        %v568 = vshrl.u32 %v567, 7
        %570 = vset.pattern.permute.xlu0 %v568
        %571 = vperm.xlu0 %570, %v566
        %v572 = vpop.permute.xlu0 %571
        %v573 = vperm.slane %v245, 3
        %v574 = vlaneseq
        %v575 = vshrl.u32 %v574, 7
        %577 = vset.pattern.permute.xlu0 %v575
        %578 = vperm.xlu0 %577, %v573
        %v579 = vpop.permute.xlu0 %578
        %v580 = vperm.slane %v245, 4
        %v581 = vlaneseq
        %v582 = vshrl.u32 %v581, 7
        %584 = vset.pattern.permute.xlu0 %v582
        %585 = vperm.xlu0 %584, %v580
        %v586 = vpop.permute.xlu0 %585
        %v587 = vperm.slane %v245, 5
        %v588 = vlaneseq
        %v589 = vshrl.u32 %v588, 7
        %591 = vset.pattern.permute.xlu0 %v589
        %592 = vperm.xlu0 %591, %v587
        %v593 = vpop.permute.xlu0 %592
        %v594 = vperm.slane %v245, 6
        %v595 = vlaneseq
        %v596 = vshrl.u32 %v595, 7
        %598 = vset.pattern.permute.xlu0 %v596
        %599 = vperm.xlu0 %598, %v594
        %v600 = vpop.permute.xlu0 %599
        %v601 = vperm.slane %v245, 7
        %v602 = vlaneseq
        %v603 = vshrl.u32 %v602, 7
        %605 = vset.pattern.permute.xlu0 %v603
        %606 = vperm.xlu0 %605, %v601
        %v607 = vpop.permute.xlu0 %606
        %v608 = vperm.slane %v246, 0
        %v609 = vlaneseq
        %v610 = vshrl.u32 %v609, 7
        %612 = vset.pattern.permute.xlu0 %v610
        %613 = vperm.xlu0 %612, %v608
        %v614 = vpop.permute.xlu0 %613
        %v615 = vperm.slane %v246, 1
        %v616 = vlaneseq
        %v617 = vshrl.u32 %v616, 7
        %619 = vset.pattern.permute.xlu0 %v617
        %620 = vperm.xlu0 %619, %v615
        %v621 = vpop.permute.xlu0 %620
        %v622 = vperm.slane %v246, 2
        %v623 = vlaneseq
        %v624 = vshrl.u32 %v623, 7
        %626 = vset.pattern.permute.xlu0 %v624
        %627 = vperm.xlu0 %626, %v622
        %v628 = vpop.permute.xlu0 %627
        %v629 = vperm.slane %v246, 3
        %v630 = vlaneseq
        %v631 = vshrl.u32 %v630, 7
        %633 = vset.pattern.permute.xlu0 %v631
        %634 = vperm.xlu0 %633, %v629
        %v635 = vpop.permute.xlu0 %634
        %v636 = vperm.slane %v246, 4
        %v637 = vlaneseq
        %v638 = vshrl.u32 %v637, 7
        %640 = vset.pattern.permute.xlu0 %v638
        %641 = vperm.xlu0 %640, %v636
        %v642 = vpop.permute.xlu0 %641
        %v643 = vperm.slane %v246, 5
        %v644 = vlaneseq
        %v645 = vshrl.u32 %v644, 7
        %647 = vset.pattern.permute.xlu0 %v645
        %648 = vperm.xlu0 %647, %v643
        %v649 = vpop.permute.xlu0 %648
        %v650 = vperm.slane %v246, 6
        %v651 = vlaneseq
        %v652 = vshrl.u32 %v651, 7
        %654 = vset.pattern.permute.xlu0 %v652
        %655 = vperm.xlu0 %654, %v650
        %v656 = vpop.permute.xlu0 %655
        %v657 = vperm.slane %v246, 7
        %v658 = vlaneseq
        %v659 = vshrl.u32 %v658, 7
        %661 = vset.pattern.permute.xlu0 %v659
        %662 = vperm.xlu0 %661, %v657
        %v663 = vpop.permute.xlu0 %662
        %v696 = vmul.f32 %v434, %v446
        %v697 = vmul.f32 %v434, %v453
        %v698 = vmul.f32 %v434, %v460
        %v699 = vmul.f32 %v434, %v467
        %v700 = vmul.f32 %v434, %v474
        %v701 = vmul.f32 %v434, %v481
        %v702 = vmul.f32 %v434, %v488
        %v703 = vmul.f32 %v434, %v495
        %v704 = vmul.f32 %v434, %v502
        %v705 = vmul.f32 %v434, %v509
        %v706 = vmul.f32 %v434, %v516
        %v707 = vmul.f32 %v434, %v523
        %v708 = vmul.f32 %v434, %v530
        %v709 = vmul.f32 %v434, %v537
        %v710 = vmul.f32 %v434, %v544
        %v711 = vmul.f32 %v434, %v551
        %v712 = vmul.f32 %v434, %v558
        %v713 = vmul.f32 %v434, %v565
        %v714 = vmul.f32 %v434, %v572
        %v715 = vmul.f32 %v434, %v579
        %v716 = vmul.f32 %v434, %v586
        %v717 = vmul.f32 %v434, %v593
        %v718 = vmul.f32 %v434, %v600
        %v719 = vmul.f32 %v434, %v607
        %v720 = vmul.f32 %v434, %v614
        %v721 = vmul.f32 %v434, %v621
        %v722 = vmul.f32 %v434, %v628
        %v723 = vmul.f32 %v434, %v635
        %v724 = vmul.f32 %v434, %v642
        %v725 = vmul.f32 %v434, %v649
        %v726 = vmul.f32 %v434, %v656
        %v727 = vmul.f32 %v434, %v663
        %v728 = vmul.f32 %v435, %v446
        %v729 = vmul.f32 %v435, %v453
        %v730 = vmul.f32 %v435, %v460
        %v731 = vmul.f32 %v435, %v467
        %v732 = vmul.f32 %v435, %v474
        %v733 = vmul.f32 %v435, %v481
        %v734 = vmul.f32 %v435, %v488
        %v735 = vmul.f32 %v435, %v495
        %v736 = vmul.f32 %v435, %v502
        %v737 = vmul.f32 %v435, %v509
        %v738 = vmul.f32 %v435, %v516
        %v739 = vmul.f32 %v435, %v523
        %v740 = vmul.f32 %v435, %v530
        %v741 = vmul.f32 %v435, %v537
        %v742 = vmul.f32 %v435, %v544
        %v743 = vmul.f32 %v435, %v551
        %v744 = vmul.f32 %v435, %v558
        %v745 = vmul.f32 %v435, %v565
        %v746 = vmul.f32 %v435, %v572
        %v747 = vmul.f32 %v435, %v579
        %v748 = vmul.f32 %v435, %v586
        %v749 = vmul.f32 %v435, %v593
        %v750 = vmul.f32 %v435, %v600
        %v751 = vmul.f32 %v435, %v607
        %v752 = vmul.f32 %v435, %v614
        %v753 = vmul.f32 %v435, %v621
        %v754 = vmul.f32 %v435, %v628
        %v755 = vmul.f32 %v435, %v635
        %v756 = vmul.f32 %v435, %v642
        %v757 = vmul.f32 %v435, %v649
        %v758 = vmul.f32 %v435, %v656
        %v759 = vmul.f32 %v435, %v663
        %824 = vset.pattern.permute.xlu0 0
        %825 = vperm.xlu0 %824, %v696
        %v826 = vpop.permute.xlu0 %825
        %827 = vset.pattern.permute.xlu0 0
        %828 = vperm.xlu0 %827, %v697
        %v829 = vpop.permute.xlu0 %828
        %830 = vset.pattern.permute.xlu0 0
        %831 = vperm.xlu0 %830, %v698
        %v832 = vpop.permute.xlu0 %831
        %833 = vset.pattern.permute.xlu0 0
        %834 = vperm.xlu0 %833, %v699
        %v835 = vpop.permute.xlu0 %834
        %836 = vset.pattern.permute.xlu0 0
        %837 = vperm.xlu0 %836, %v700
        %v838 = vpop.permute.xlu0 %837
        %839 = vset.pattern.permute.xlu0 0
        %840 = vperm.xlu0 %839, %v701
        %v841 = vpop.permute.xlu0 %840
        %842 = vset.pattern.permute.xlu0 0
        %843 = vperm.xlu0 %842, %v702
        %v844 = vpop.permute.xlu0 %843
        %845 = vset.pattern.permute.xlu0 0
        %846 = vperm.xlu0 %845, %v703
        %v847 = vpop.permute.xlu0 %846
        %848 = vset.pattern.permute.xlu0 0
        %849 = vperm.xlu0 %848, %v704
        %v850 = vpop.permute.xlu0 %849
        %851 = vset.pattern.permute.xlu0 0
        %852 = vperm.xlu0 %851, %v705
        %v853 = vpop.permute.xlu0 %852
        %854 = vset.pattern.permute.xlu0 0
        %855 = vperm.xlu0 %854, %v706
        %v856 = vpop.permute.xlu0 %855
        %857 = vset.pattern.permute.xlu0 0
        %858 = vperm.xlu0 %857, %v707
        %v859 = vpop.permute.xlu0 %858
        %860 = vset.pattern.permute.xlu0 0
        %861 = vperm.xlu0 %860, %v708
        %v862 = vpop.permute.xlu0 %861
        %863 = vset.pattern.permute.xlu0 0
        %864 = vperm.xlu0 %863, %v709
        %v865 = vpop.permute.xlu0 %864
        %866 = vset.pattern.permute.xlu0 0
        %867 = vperm.xlu0 %866, %v710
        %v868 = vpop.permute.xlu0 %867
        %869 = vset.pattern.permute.xlu0 0
        %870 = vperm.xlu0 %869, %v711
        %v871 = vpop.permute.xlu0 %870
        %872 = vset.pattern.permute.xlu0 0
        %873 = vperm.xlu0 %872, %v712
        %v874 = vpop.permute.xlu0 %873
        %875 = vset.pattern.permute.xlu0 0
        %876 = vperm.xlu0 %875, %v713
        %v877 = vpop.permute.xlu0 %876
        %878 = vset.pattern.permute.xlu0 0
        %879 = vperm.xlu0 %878, %v714
        %v880 = vpop.permute.xlu0 %879
        %881 = vset.pattern.permute.xlu0 0
        %882 = vperm.xlu0 %881, %v715
        %v883 = vpop.permute.xlu0 %882
        %884 = vset.pattern.permute.xlu0 0
        %885 = vperm.xlu0 %884, %v716
        %v886 = vpop.permute.xlu0 %885
        %887 = vset.pattern.permute.xlu0 0
        %888 = vperm.xlu0 %887, %v717
        %v889 = vpop.permute.xlu0 %888
        %890 = vset.pattern.permute.xlu0 0
        %891 = vperm.xlu0 %890, %v718
        %v892 = vpop.permute.xlu0 %891
        %893 = vset.pattern.permute.xlu0 0
        %894 = vperm.xlu0 %893, %v719
        %v895 = vpop.permute.xlu0 %894
        %896 = vset.pattern.permute.xlu0 0
        %897 = vperm.xlu0 %896, %v720
        %v898 = vpop.permute.xlu0 %897
        %899 = vset.pattern.permute.xlu0 0
        %900 = vperm.xlu0 %899, %v721
        %v901 = vpop.permute.xlu0 %900
        %902 = vset.pattern.permute.xlu0 0
        %903 = vperm.xlu0 %902, %v722
        %v904 = vpop.permute.xlu0 %903
        %905 = vset.pattern.permute.xlu0 0
        %906 = vperm.xlu0 %905, %v723
        %v907 = vpop.permute.xlu0 %906
        %908 = vset.pattern.permute.xlu0 0
        %909 = vperm.xlu0 %908, %v724
        %v910 = vpop.permute.xlu0 %909
        %911 = vset.pattern.permute.xlu0 0
        %912 = vperm.xlu0 %911, %v725
        %v913 = vpop.permute.xlu0 %912
        %914 = vset.pattern.permute.xlu0 0
        %915 = vperm.xlu0 %914, %v726
        %v916 = vpop.permute.xlu0 %915
        %917 = vset.pattern.permute.xlu0 0
        %918 = vperm.xlu0 %917, %v727
        %v919 = vpop.permute.xlu0 %918
        %920 = vset.pattern.permute.xlu0 0
        %921 = vperm.xlu0 %920, %v728
        %v922 = vpop.permute.xlu0 %921
        %923 = vset.pattern.permute.xlu0 0
        %924 = vperm.xlu0 %923, %v729
        %v925 = vpop.permute.xlu0 %924
        %926 = vset.pattern.permute.xlu0 0
        %927 = vperm.xlu0 %926, %v730
        %v928 = vpop.permute.xlu0 %927
        %929 = vset.pattern.permute.xlu0 0
        %930 = vperm.xlu0 %929, %v731
        %v931 = vpop.permute.xlu0 %930
        %932 = vset.pattern.permute.xlu0 0
        %933 = vperm.xlu0 %932, %v732
        %v934 = vpop.permute.xlu0 %933
        %935 = vset.pattern.permute.xlu0 0
        %936 = vperm.xlu0 %935, %v733
        %v937 = vpop.permute.xlu0 %936
        %938 = vset.pattern.permute.xlu0 0
        %939 = vperm.xlu0 %938, %v734
        %v940 = vpop.permute.xlu0 %939
        %941 = vset.pattern.permute.xlu0 0
        %942 = vperm.xlu0 %941, %v735
        %v943 = vpop.permute.xlu0 %942
        %944 = vset.pattern.permute.xlu0 0
        %945 = vperm.xlu0 %944, %v736
        %v946 = vpop.permute.xlu0 %945
        %947 = vset.pattern.permute.xlu0 0
        %948 = vperm.xlu0 %947, %v737
        %v949 = vpop.permute.xlu0 %948
        %950 = vset.pattern.permute.xlu0 0
        %951 = vperm.xlu0 %950, %v738
        %v952 = vpop.permute.xlu0 %951
        %953 = vset.pattern.permute.xlu0 0
        %954 = vperm.xlu0 %953, %v739
        %v955 = vpop.permute.xlu0 %954
        %956 = vset.pattern.permute.xlu0 0
        %957 = vperm.xlu0 %956, %v740
        %v958 = vpop.permute.xlu0 %957
        %959 = vset.pattern.permute.xlu0 0
        %960 = vperm.xlu0 %959, %v741
        %v961 = vpop.permute.xlu0 %960
        %962 = vset.pattern.permute.xlu0 0
        %963 = vperm.xlu0 %962, %v742
        %v964 = vpop.permute.xlu0 %963
        %965 = vset.pattern.permute.xlu0 0
        %966 = vperm.xlu0 %965, %v743
        %v967 = vpop.permute.xlu0 %966
        %968 = vset.pattern.permute.xlu0 0
        %969 = vperm.xlu0 %968, %v744
        %v970 = vpop.permute.xlu0 %969
        %971 = vset.pattern.permute.xlu0 0
        %972 = vperm.xlu0 %971, %v745
        %v973 = vpop.permute.xlu0 %972
        %974 = vset.pattern.permute.xlu0 0
        %975 = vperm.xlu0 %974, %v746
        %v976 = vpop.permute.xlu0 %975
        %977 = vset.pattern.permute.xlu0 0
        %978 = vperm.xlu0 %977, %v747
        %v979 = vpop.permute.xlu0 %978
        %980 = vset.pattern.permute.xlu0 0
        %981 = vperm.xlu0 %980, %v748
        %v982 = vpop.permute.xlu0 %981
        %983 = vset.pattern.permute.xlu0 0
        %984 = vperm.xlu0 %983, %v749
        %v985 = vpop.permute.xlu0 %984
        %986 = vset.pattern.permute.xlu0 0
        %987 = vperm.xlu0 %986, %v750
        %v988 = vpop.permute.xlu0 %987
        %989 = vset.pattern.permute.xlu0 0
        %990 = vperm.xlu0 %989, %v751
        %v991 = vpop.permute.xlu0 %990
        %992 = vset.pattern.permute.xlu0 0
        %993 = vperm.xlu0 %992, %v752
        %v994 = vpop.permute.xlu0 %993
        %995 = vset.pattern.permute.xlu0 0
        %996 = vperm.xlu0 %995, %v753
        %v997 = vpop.permute.xlu0 %996
        %998 = vset.pattern.permute.xlu0 0
        %999 = vperm.xlu0 %998, %v754
        %v1000 = vpop.permute.xlu0 %999
        %1001 = vset.pattern.permute.xlu0 0
        %1002 = vperm.xlu0 %1001, %v755
        %v1003 = vpop.permute.xlu0 %1002
        %1004 = vset.pattern.permute.xlu0 0
        %1005 = vperm.xlu0 %1004, %v756
        %v1006 = vpop.permute.xlu0 %1005
        %1007 = vset.pattern.permute.xlu0 0
        %1008 = vperm.xlu0 %1007, %v757
        %v1009 = vpop.permute.xlu0 %1008
        %1010 = vset.pattern.permute.xlu0 0
        %1011 = vperm.xlu0 %1010, %v758
        %v1012 = vpop.permute.xlu0 %1011
        %1013 = vset.pattern.permute.xlu0 0
        %1014 = vperm.xlu0 %1013, %v759
        %v1015 = vpop.permute.xlu0 %1014
        %v1016 = vperm.slane %v826, %v387
        %v1017 = vperm.slane %v829, %v387
        %v1018 = vperm.slane %v832, %v387
        %v1019 = vperm.slane %v835, %v387
        %v1020 = vperm.slane %v838, %v387
        %v1021 = vperm.slane %v841, %v387
        %v1022 = vperm.slane %v844, %v387
        %v1023 = vperm.slane %v847, %v387
        %v1024 = vperm.slane %v850, %v387
        %v1025 = vperm.slane %v853, %v387
        %v1026 = vperm.slane %v856, %v387
        %v1027 = vperm.slane %v859, %v387
        %v1028 = vperm.slane %v862, %v387
        %v1029 = vperm.slane %v865, %v387
        %v1030 = vperm.slane %v868, %v387
        %v1031 = vperm.slane %v871, %v387
        %v1032 = vperm.slane %v874, %v387
        %v1033 = vperm.slane %v877, %v387
        %v1034 = vperm.slane %v880, %v387
        %v1035 = vperm.slane %v883, %v387
        %v1036 = vperm.slane %v886, %v387
        %v1037 = vperm.slane %v889, %v387
        %v1038 = vperm.slane %v892, %v387
        %v1039 = vperm.slane %v895, %v387
        %v1040 = vperm.slane %v898, %v387
        %v1041 = vperm.slane %v901, %v387
        %v1042 = vperm.slane %v904, %v387
        %v1043 = vperm.slane %v907, %v387
        %v1044 = vperm.slane %v910, %v387
        %v1045 = vperm.slane %v913, %v387
        %v1046 = vperm.slane %v916, %v387
        %v1047 = vperm.slane %v919, %v387
        %v1048 = vperm.slane %v922, %v387
        %v1049 = vperm.slane %v925, %v387
        %v1050 = vperm.slane %v928, %v387
        %v1051 = vperm.slane %v931, %v387
        %v1052 = vperm.slane %v934, %v387
        %v1053 = vperm.slane %v937, %v387
        %v1054 = vperm.slane %v940, %v387
        %v1055 = vperm.slane %v943, %v387
        %v1056 = vperm.slane %v946, %v387
        %v1057 = vperm.slane %v949, %v387
        %v1058 = vperm.slane %v952, %v387
        %v1059 = vperm.slane %v955, %v387
        %v1060 = vperm.slane %v958, %v387
        %v1061 = vperm.slane %v961, %v387
        %v1062 = vperm.slane %v964, %v387
        %v1063 = vperm.slane %v967, %v387
        %v1064 = vperm.slane %v970, %v387
        %v1065 = vperm.slane %v973, %v387
        %v1066 = vperm.slane %v976, %v387
        %v1067 = vperm.slane %v979, %v387
        %v1068 = vperm.slane %v982, %v387
        %v1069 = vperm.slane %v985, %v387
        %v1070 = vperm.slane %v988, %v387
        %v1071 = vperm.slane %v991, %v387
        %v1072 = vperm.slane %v994, %v387
        %v1073 = vperm.slane %v997, %v387
        %v1074 = vperm.slane %v1000, %v387
        %v1075 = vperm.slane %v1003, %v387
        %v1076 = vperm.slane %v1006, %v387
        %v1077 = vperm.slane %v1009, %v387
        %v1078 = vperm.slane %v1012, %v387
        %v1079 = vperm.slane %v1015, %v387
        %v1080 = vsel %vm422, %v1017, %v1016
        %vm1081 = vcmask 1042434
        %v1082 = vsel %vm1081, %v1018, %v1080
        %vm1083 = vcmask 1043459
        %v1084 = vsel %vm1083, %v1019, %v1082
        %vm1085 = vcmask 1044484
        %v1086 = vsel %vm1085, %v1020, %v1084
        %vm1087 = vcmask 1045509
        %v1088 = vsel %vm1087, %v1021, %v1086
        %vm1089 = vcmask 1046534
        %v1090 = vsel %vm1089, %v1022, %v1088
        %vm1091 = vcmask 1047559
        %v1092 = vsel %vm1091, %v1023, %v1090
        %v1093 = vsel %vm422, %v1025, %v1024
        %v1094 = vsel %vm1081, %v1026, %v1093
        %v1095 = vsel %vm1083, %v1027, %v1094
        %v1096 = vsel %vm1085, %v1028, %v1095
        %v1097 = vsel %vm1087, %v1029, %v1096
        %v1098 = vsel %vm1089, %v1030, %v1097
        %v1099 = vsel %vm1091, %v1031, %v1098
        %v1100 = vsel %vm422, %v1033, %v1032
        %v1101 = vsel %vm1081, %v1034, %v1100
        %v1102 = vsel %vm1083, %v1035, %v1101
        %v1103 = vsel %vm1085, %v1036, %v1102
        %v1104 = vsel %vm1087, %v1037, %v1103
        %v1105 = vsel %vm1089, %v1038, %v1104
        %v1106 = vsel %vm1091, %v1039, %v1105
        %v1107 = vsel %vm422, %v1041, %v1040
        %v1108 = vsel %vm1081, %v1042, %v1107
        %v1109 = vsel %vm1083, %v1043, %v1108
        %v1110 = vsel %vm1085, %v1044, %v1109
        %v1111 = vsel %vm1087, %v1045, %v1110
        %v1112 = vsel %vm1089, %v1046, %v1111
        %v1113 = vsel %vm1091, %v1047, %v1112
        %v1114 = vsel %vm422, %v1049, %v1048
        %v1115 = vsel %vm1081, %v1050, %v1114
        %v1116 = vsel %vm1083, %v1051, %v1115
        %v1117 = vsel %vm1085, %v1052, %v1116
        %v1118 = vsel %vm1087, %v1053, %v1117
        %v1119 = vsel %vm1089, %v1054, %v1118
        %v1120 = vsel %vm1091, %v1055, %v1119
        %v1121 = vsel %vm422, %v1057, %v1056
        %v1122 = vsel %vm1081, %v1058, %v1121
        %v1123 = vsel %vm1083, %v1059, %v1122
        %v1124 = vsel %vm1085, %v1060, %v1123
        %v1125 = vsel %vm1087, %v1061, %v1124
        %v1126 = vsel %vm1089, %v1062, %v1125
        %v1127 = vsel %vm1091, %v1063, %v1126
        %v1128 = vsel %vm422, %v1065, %v1064
        %v1129 = vsel %vm1081, %v1066, %v1128
        %v1130 = vsel %vm1083, %v1067, %v1129
        %v1131 = vsel %vm1085, %v1068, %v1130
        %v1132 = vsel %vm1087, %v1069, %v1131
        %v1133 = vsel %vm1089, %v1070, %v1132
        %v1134 = vsel %vm1091, %v1071, %v1133
        %v1135 = vsel %vm422, %v1073, %v1072
        %v1136 = vsel %vm1081, %v1074, %v1135
        %v1137 = vsel %vm1083, %v1075, %v1136
        %v1138 = vsel %vm1085, %v1076, %v1137
        %v1139 = vsel %vm1087, %v1077, %v1138
        %v1140 = vsel %vm1089, %v1078, %v1139
        %v1141 = vsel %vm1091, %v1079, %v1140
        %vm1150 = vcmask 15360
        %v1151 = vsel %vm1150, %v1092, 0.0
        %1152 = vadd.xlane.f32.xlu0 %v1151
        %v1153 = vpop.xlane.xlu0 %1152
        %v1154 = vsel %vm1150, %v1099, 0.0
        %1155 = vadd.xlane.f32.xlu0 %v1154
        %v1156 = vpop.xlane.xlu0 %1155
        %v1157 = vsel %vm1150, %v1106, 0.0
        %1158 = vadd.xlane.f32.xlu0 %v1157
        %v1159 = vpop.xlane.xlu0 %1158
        %v1160 = vsel %vm1150, %v1113, 0.0
        %1161 = vadd.xlane.f32.xlu0 %v1160
        %v1162 = vpop.xlane.xlu0 %1161
        %v1163 = vsel %vm1150, %v1120, 0.0
        %1164 = vadd.xlane.f32.xlu0 %v1163
        %v1165 = vpop.xlane.xlu0 %1164
        %v1166 = vsel %vm1150, %v1127, 0.0
        %1167 = vadd.xlane.f32.xlu0 %v1166
        %v1168 = vpop.xlane.xlu0 %1167
        %v1169 = vsel %vm1150, %v1134, 0.0
        %1170 = vadd.xlane.f32.xlu0 %v1169
        %v1171 = vpop.xlane.xlu0 %1170
        %v1172 = vsel %vm1150, %v1141, 0.0
        %1173 = vadd.xlane.f32.xlu0 %v1172
        %v1174 = vpop.xlane.xlu0 %1173
        %v1175 = vxor.u32 %v1153, 2147483648
        %v1176 = vxor.u32 %v1156, 2147483648
        %v1177 = vxor.u32 %v1159, 2147483648
        %v1178 = vxor.u32 %v1162, 2147483648
        %v1179 = vxor.u32 %v1165, 2147483648
        %v1180 = vxor.u32 %v1168, 2147483648
        %v1181 = vxor.u32 %v1171, 2147483648
        %v1182 = vxor.u32 %v1174, 2147483648
        %v1183 = vmul.f32 %v1175, 1.442695
        %v1184 = vpow.pop %v1183
        %v1185 = vmul.f32 %v1176, 1.442695
        %v1186 = vpow.pop %v1185
        %v1187 = vmul.f32 %v1177, 1.442695
        %v1188 = vpow.pop %v1187
        %v1189 = vmul.f32 %v1178, 1.442695
        %v1190 = vpow.pop %v1189
        %v1191 = vmul.f32 %v1179, 1.442695
        %v1192 = vpow.pop %v1191
        %v1193 = vmul.f32 %v1180, 1.442695
        %v1194 = vpow.pop %v1193
        %v1195 = vmul.f32 %v1181, 1.442695
        %v1196 = vpow.pop %v1195
        %v1197 = vmul.f32 %v1182, 1.442695
        %v1198 = vpow.pop %v1197
        %v1199 = vadd.f32 %v1184, 1.0
        %v1200 = vadd.f32 %v1186, 1.0
        %v1201 = vadd.f32 %v1188, 1.0
        %v1202 = vadd.f32 %v1190, 1.0
        %v1203 = vadd.f32 %v1192, 1.0
        %v1204 = vadd.f32 %v1194, 1.0
        %v1205 = vadd.f32 %v1196, 1.0
        %v1206 = vadd.f32 %v1198, 1.0
        %v1207 = vrcp.pop %v1199
        %v1208 = vmul.f32 %v1199, %v1207
        %v1209 = vsub.f32 1.0, %v1208
        %v1210 = vmul.f32 %v1207, %v1209
        %v1211 = vadd.f32 %v1207, %v1210
        %vm1212 = vweird.f32 %v1199
        %vm1213 = vweird.f32 %v1207
        %vm1214 = vmor %vm1212, %vm1213
        %v1215 = vsel %vm1214, %v1207, %v1211
        %v1216 = vand.u32 2147483647, %v1199
        %vm1217 = vcmp.eq.f32.partialorder %v1216, 8.507059e+37
        %v1218 = vand.u32 %v1199, 2147483648
        %v1219 = vor.u32 1.1754944e-38, %v1218
        %v1220 = vsel %vm1217, %v1219, %v1215
        %v1221 = vmul.f32 1.0, %v1220
        %v1222 = vrcp.pop %v1200
        %v1223 = vmul.f32 %v1200, %v1222
        %v1224 = vsub.f32 1.0, %v1223
        %v1225 = vmul.f32 %v1222, %v1224
        %v1226 = vadd.f32 %v1222, %v1225
        %vm1227 = vweird.f32 %v1200
        %vm1228 = vweird.f32 %v1222
        %vm1229 = vmor %vm1227, %vm1228
        %v1230 = vsel %vm1229, %v1222, %v1226
        %v1231 = vand.u32 2147483647, %v1200
        %vm1232 = vcmp.eq.f32.partialorder %v1231, 8.507059e+37
        %v1233 = vand.u32 %v1200, 2147483648
        %v1234 = vor.u32 1.1754944e-38, %v1233
        %v1235 = vsel %vm1232, %v1234, %v1230
        %v1236 = vmul.f32 1.0, %v1235
        %v1237 = vrcp.pop %v1201
        %v1238 = vmul.f32 %v1201, %v1237
        %v1239 = vsub.f32 1.0, %v1238
        %v1240 = vmul.f32 %v1237, %v1239
        %v1241 = vadd.f32 %v1237, %v1240
        %vm1242 = vweird.f32 %v1201
        %vm1243 = vweird.f32 %v1237
        %vm1244 = vmor %vm1242, %vm1243
        %v1245 = vsel %vm1244, %v1237, %v1241
        %v1246 = vand.u32 2147483647, %v1201
        %vm1247 = vcmp.eq.f32.partialorder %v1246, 8.507059e+37
        %v1248 = vand.u32 %v1201, 2147483648
        %v1249 = vor.u32 1.1754944e-38, %v1248
        %v1250 = vsel %vm1247, %v1249, %v1245
        %v1251 = vmul.f32 1.0, %v1250
        %v1252 = vrcp.pop %v1202
        %v1253 = vmul.f32 %v1202, %v1252
        %v1254 = vsub.f32 1.0, %v1253
        %v1255 = vmul.f32 %v1252, %v1254
        %v1256 = vadd.f32 %v1252, %v1255
        %vm1257 = vweird.f32 %v1202
        %vm1258 = vweird.f32 %v1252
        %vm1259 = vmor %vm1257, %vm1258
        %v1260 = vsel %vm1259, %v1252, %v1256
        %v1261 = vand.u32 2147483647, %v1202
        %vm1262 = vcmp.eq.f32.partialorder %v1261, 8.507059e+37
        %v1263 = vand.u32 %v1202, 2147483648
        %v1264 = vor.u32 1.1754944e-38, %v1263
        %v1265 = vsel %vm1262, %v1264, %v1260
        %v1266 = vmul.f32 1.0, %v1265
        %v1267 = vrcp.pop %v1203
        %v1268 = vmul.f32 %v1203, %v1267
        %v1269 = vsub.f32 1.0, %v1268
        %v1270 = vmul.f32 %v1267, %v1269
        %v1271 = vadd.f32 %v1267, %v1270
        %vm1272 = vweird.f32 %v1203
        %vm1273 = vweird.f32 %v1267
        %vm1274 = vmor %vm1272, %vm1273
        %v1275 = vsel %vm1274, %v1267, %v1271
        %v1276 = vand.u32 2147483647, %v1203
        %vm1277 = vcmp.eq.f32.partialorder %v1276, 8.507059e+37
        %v1278 = vand.u32 %v1203, 2147483648
        %v1279 = vor.u32 1.1754944e-38, %v1278
        %v1280 = vsel %vm1277, %v1279, %v1275
        %v1281 = vmul.f32 1.0, %v1280
        %v1282 = vrcp.pop %v1204
        %v1283 = vmul.f32 %v1204, %v1282
        %v1284 = vsub.f32 1.0, %v1283
        %v1285 = vmul.f32 %v1282, %v1284
        %v1286 = vadd.f32 %v1282, %v1285
        %vm1287 = vweird.f32 %v1204
        %vm1288 = vweird.f32 %v1282
        %vm1289 = vmor %vm1287, %vm1288
        %v1290 = vsel %vm1289, %v1282, %v1286
        %v1291 = vand.u32 2147483647, %v1204
        %vm1292 = vcmp.eq.f32.partialorder %v1291, 8.507059e+37
        %v1293 = vand.u32 %v1204, 2147483648
        %v1294 = vor.u32 1.1754944e-38, %v1293
        %v1295 = vsel %vm1292, %v1294, %v1290
        %v1296 = vmul.f32 1.0, %v1295
        %v1297 = vrcp.pop %v1205
        %v1298 = vmul.f32 %v1205, %v1297
        %v1299 = vsub.f32 1.0, %v1298
        %v1300 = vmul.f32 %v1297, %v1299
        %v1301 = vadd.f32 %v1297, %v1300
        %vm1302 = vweird.f32 %v1205
        %vm1303 = vweird.f32 %v1297
        %vm1304 = vmor %vm1302, %vm1303
        %v1305 = vsel %vm1304, %v1297, %v1301
        %v1306 = vand.u32 2147483647, %v1205
        %vm1307 = vcmp.eq.f32.partialorder %v1306, 8.507059e+37
        %v1308 = vand.u32 %v1205, 2147483648
        %v1309 = vor.u32 1.1754944e-38, %v1308
        %v1310 = vsel %vm1307, %v1309, %v1305
        %v1311 = vmul.f32 1.0, %v1310
        %v1312 = vrcp.pop %v1206
        %v1313 = vmul.f32 %v1206, %v1312
        %v1314 = vsub.f32 1.0, %v1313
        %v1315 = vmul.f32 %v1312, %v1314
        %v1316 = vadd.f32 %v1312, %v1315
        %vm1317 = vweird.f32 %v1206
        %vm1318 = vweird.f32 %v1312
        %vm1319 = vmor %vm1317, %vm1318
        %v1320 = vsel %vm1319, %v1312, %v1316
        %v1321 = vand.u32 2147483647, %v1206
        %vm1322 = vcmp.eq.f32.partialorder %v1321, 8.507059e+37
        %v1323 = vand.u32 %v1206, 2147483648
        %v1324 = vor.u32 1.1754944e-38, %v1323
        %v1325 = vsel %vm1322, %v1324, %v1320
        %v1326 = vmul.f32 1.0, %v1325
        %v1327 = vmul.f32 %v194, %v1221
        %v1328 = vmul.f32 %v195, %v1221
        %v1329 = vmul.f32 %v196, %v1236
        %v1330 = vmul.f32 %v197, %v1236
        %v1331 = vmul.f32 %v198, %v1251
        %v1332 = vmul.f32 %v199, %v1251
        %v1333 = vmul.f32 %v200, %v1266
        %v1334 = vmul.f32 %v201, %v1266
        %v1335 = vmul.f32 %v202, %v1281
        %v1336 = vmul.f32 %v203, %v1281
        %v1337 = vmul.f32 %v204, %v1296
        %v1338 = vmul.f32 %v205, %v1296
        %v1339 = vmul.f32 %v206, %v1311
        %v1340 = vmul.f32 %v207, %v1311
        %v1341 = vmul.f32 %v208, %v1326
        %v1342 = vmul.f32 %v209, %v1326
        %1343 = vst [vmem:[%s191] sm:$0xff] %v1327
        %1344 = vst [vmem:[%s191 + $0x8] sm:$0xff] %v1328
        %1345 = vst [vmem:[%s191 + $0x10] sm:$0xff] %v1329
        %1346 = vst [vmem:[%s191 + $0x18] sm:$0xff] %v1330
        %1347 = vst [vmem:[%s191 + $0x20] sm:$0xff] %v1331
        %1348 = vst [vmem:[%s191 + $0x28] sm:$0xff] %v1332
        %1349 = vst [vmem:[%s191 + $0x30] sm:$0xff] %v1333
        %1350 = vst [vmem:[%s191 + $0x38] sm:$0xff] %v1334
        %1351 = vst [vmem:[%s191 + $0x40] sm:$0xff] %v1335
        %1352 = vst [vmem:[%s191 + $0x48] sm:$0xff] %v1336
        %1353 = vst [vmem:[%s191 + $0x50] sm:$0xff] %v1337
        %1354 = vst [vmem:[%s191 + $0x58] sm:$0xff] %v1338
        %1355 = vst [vmem:[%s191 + $0x60] sm:$0xff] %v1339
        %1356 = vst [vmem:[%s191 + $0x68] sm:$0xff] %v1340
        %1357 = vst [vmem:[%s191 + $0x70] sm:$0xff] %v1341
        %1358 = vst [vmem:[%s191 + $0x78] sm:$0xff] %v1342
        %s1359 = sand.u32 %s96, 1
        %s1360 = scalar_lea.sflag [#allocation4], %s1359
        %s1361 = sand.u32 %s96, 1
        %s1362 = smul.addr %s1361, 128
        %s1363 = scalar_lea.vmem [#allocation5], %s1362
        // Predicated region
        $region37: #{tpu_custom_call.1} parent=31 // pred_check
          %p1364 = pneg %p106
        $region38: #{tpu_custom_call.1} parent=31 // pred_check_branch
          %1366 = sbr.rel (%p1364) target = $region40
        $region39: #{tpu_custom_call.1} parent=31 // pred_region
          %s1367 = smul.u32 2, %s20
          %1369 = vsyncadd %s1360, 0
          %s1370 = smul.addr %s1367, 8
          %s1371 = smul.addr %s1370, 8
          %s1372 = scalar_lea.hbm %s3, %s1371
          %s1373 = sshll.u32 %s1363, 4
          %s1374 = int_to_ptr.vmem [resolvable:$true] %s1373
          %s1375 = sshll.u32 %s1372, 4
          %s1376 = int_to_ptr.hbm [resolvable:$true] %s1375
          %1381 = dma.vmem_to_hbm [thread:$0]  %s1374, 2048, %s1376, %s1360, 256, 256, 16
        $region40: #{tpu_custom_call.1} parent=31 // pred_fallthru
          _
      $region32: #{tpu_custom_call.1} parent=5 // pred_fallthru
        _
      %p1382 = scmp.le.s32.totalorder 2, %s15
      // Predicated region
      $region41: #{tpu_custom_call.1} parent=5 // pred_check
        %p1383 = pneg %p1382
      $region42: #{tpu_custom_call.1} parent=5 // pred_check_branch
        %1385 = sbr.rel (%p1383) target = $region44
      $region43: #{tpu_custom_call.1} parent=5 // pred_region
        %s1386 = ssub.s32 %s15, 2
        // Predicated region
        $region45: #{tpu_custom_call.1} parent=43 // pred_check
          %p1387 = pneg %p112
        $region46: #{tpu_custom_call.1} parent=43 // pred_check_branch
          %1389 = sbr.rel (%p1387) target = $region48
        $region47: #{tpu_custom_call.1} parent=43 // pred_region
          %s1390 = sand.u32 %s97, 1
          %s1391 = scalar_lea.sflag [#allocation4], %s1390
          %s1392 = sand.u32 %s97, 1
          %s1393 = smul.addr %s1392, 128
          %s1394 = scalar_lea.vmem [#allocation5], %s1393
          %1396 = dma.done %s1391, 2048
        $region48: #{tpu_custom_call.1} parent=43 // pred_fallthru
          _
      $region44: #{tpu_custom_call.1} parent=5 // pred_fallthru
        _
    $region6: #{tpu_custom_call.1} parent=1 // loop_footer
      %s19 = sadd.s32 1, %s15
    $region7: #{tpu_custom_call.1} parent=1 // loop_footer_branch
      %14 = sbr.rel target = $region3
    $region8: #{tpu_custom_call.1} parent=1 // loop_exit
      _
    %1397 = vsyncpa [#allocation3], 1
    %s1398 = scalar_lea.sflag [#allocation3], 1
    %1399 = vsyncpa %s1398, 1
    %1400 = vsyncpa [#allocation4], 1
    %s1401 = scalar_lea.sflag [#allocation4], 1
    %1402 = vsyncpa %s1401, 1

</llo_original>
